<compile_context>
chip_gen: v5e
topology: v5e:2x2
jax: 0.10.0
libtpu: 0.0.40
codegen_flags: <defaults>
</compile_context>

<pallas_src>
import functools

import jax
import jax.numpy as jnp
from jax.experimental import pallas as pl
from jax.experimental.pallas import tpu as pltpu


def _round_up(x: int, m: int) -> int:
    return (x + m - 1) // m * m


def ranknet_kernel(xi_ref, xj_ref, ti_ref, tj_ref,
                   w1_ref, b1_ref, w2_ref, b2_ref, w3_ref, b3_ref, w4t_ref,
                   loss_ref):
    tb = xi_ref.shape[0]

    # Single matmul stream over the concatenated (i, j) batch: (2*TB, D).
    # Concat in f32 (sublane-aligned), cast once to bf16 for the MXU.
    x = jnp.concatenate([xi_ref[...], xj_ref[...]], axis=0).astype(jnp.bfloat16)

    # Layers 1 and 2: bf16 in, f32 accumulate, relu, recast to bf16.
    h = jnp.dot(x, w1_ref[...], preferred_element_type=jnp.float32) + b1_ref[...]
    h = jnp.maximum(h, 0.0).astype(jnp.bfloat16)                       # (2TB, 128)
    h = jnp.dot(h, w2_ref[...], preferred_element_type=jnp.float32) + b2_ref[...]
    h = jnp.maximum(h, 0.0).astype(jnp.bfloat16)                       # (2TB, 64)
    # Layer 3: keep the result in f32 (feeds the f32 score contraction).
    h3 = jnp.dot(h, w3_ref[...], preferred_element_type=jnp.float32) + b3_ref[...]
    h3 = jnp.maximum(h3, 0.0)                                          # (2TB, 32) f32

    # Pairwise diff of the layer-3 activations; the l4 bias cancels exactly.
    h_diff = h3[:tb] - h3[tb:]                                         # (TB, 32) f32

    # Lane-dense score diff: (1, TB) = w4^T (1,32) contracted with h_diff over
    # the 32-dim (batch stays on lanes for the whole loss tail).
    s_diff = jnp.einsum('od,bd->ob', w4t_ref[...], h_diff,
                        preferred_element_type=jnp.float32)            # (1, TB)
    s_diff = jnp.clip(s_diff, 0.1, 100.0)                              # torch.clamp(0.1, 100)

    t_i = ti_ref[...]
    t_j = tj_ref[...]
    # S_ij: +1 where t_i>t_j, -1 where t_i<t_j, 0 where equal.
    S_ij = jnp.where(t_i > t_j, 1.0, jnp.where(t_i < t_j, -1.0, 0.0))

    loss = (1.0 - S_ij) * s_diff * 0.5 + jnp.log(1.0 + jnp.exp(-s_diff))
    loss_ref[...] = jnp.clip(loss, 0.1, 10.0)                          # torch.clamp(0.1, 10)


@functools.partial(jax.jit, static_argnames=("tile_b",))
def ranknet_pallas(x_i, x_j, t_i, t_j, params, tile_b: int = 512):
    B, D = x_i.shape
    w1, b1, w2, b2, w3, b3, w4, b4 = params
    del b4  # cancels in s_i - s_j, never needed for the pairwise loss

    # Pick the batch tile: one tile for small B, else tile_b (multiple of 128
    # so the lane-dense (1, TB) output blocks satisfy the (8, 128) constraint).
    if B <= tile_b:
        tb = _round_up(max(B, 1), 8)
    else:
        assert tile_b % 128 == 0, "tile_b must be a multiple of 128"
        tb = tile_b
    b_pad = _round_up(B, tb)
    grid = (b_pad // tb,)

    def pad_rows(a):
        a = a.astype(jnp.float32)
        return a if a.shape[0] == b_pad else jnp.pad(a, ((0, b_pad - B), (0, 0)))

    def pad_t(t):
        t = t.reshape(-1).astype(jnp.float32)
        if t.shape[0] != b_pad:
            t = jnp.pad(t, (0, b_pad - B))
        return t.reshape(1, b_pad)

    xi = pad_rows(x_i)
    xj = pad_rows(x_j)
    ti = pad_t(t_i)
    tj = pad_t(t_j)

    # Weights for layers 1-3 in bf16 (half the resident VMEM, native MXU dtype);
    # biases and the tiny folded w4 stay f32.
    w1b = w1.astype(jnp.bfloat16)
    w2b = w2.astype(jnp.bfloat16)
    w3b = w3.astype(jnp.bfloat16)
    w4t = w4.reshape(1, -1).astype(jnp.float32)          # (1, 32)
    b1r = b1.reshape(1, -1).astype(jnp.float32)
    b2r = b2.reshape(1, -1).astype(jnp.float32)
    b3r = b3.reshape(1, -1).astype(jnp.float32)

    x_spec = pl.BlockSpec((tb, D), lambda i: (i, 0))
    t_spec = pl.BlockSpec((1, tb), lambda i: (0, i))

    def resident(shape):
        # Constant index_map -> block revisited every step, DMA'd only once.
        return pl.BlockSpec(shape, lambda i: (0, 0))

    loss_2d = pl.pallas_call(
        ranknet_kernel,
        out_shape=jax.ShapeDtypeStruct((1, b_pad), jnp.float32),
        grid=grid,
        in_specs=[
            x_spec, x_spec, t_spec, t_spec,
            resident(w1b.shape), resident(b1r.shape),
            resident(w2b.shape), resident(b2r.shape),
            resident(w3b.shape), resident(b3r.shape),
            resident(w4t.shape),
        ],
        out_specs=pl.BlockSpec((1, tb), lambda i: (0, i)),
        compiler_params=pltpu.CompilerParams(
            dimension_semantics=("parallel",)),
    )(xi, xj, ti, tj, w1b, b1r, w2b, b2r, w3b, b3r, w4t)

    return loss_2d[0, :B]   # matches torch: loss has the shape of t_i, i.e. (B,)


def init_params(key, input_dim):
    """PyTorch-style Linear init: U(-1/sqrt(fan_in), 1/sqrt(fan_in)).
    Weights stored as (in, out) so the kernel computes x @ W."""
    dims = [(input_dim, 128), (128, 64), (64, 32), (32, 1)]
    params = []
    for fin, fout in dims:
        key, kw, kb = jax.random.split(key, 3)
        bound = 1.0 / jnp.sqrt(float(fin))
        w = jax.random.uniform(kw, (fin, fout), jnp.float32, -bound, bound)
        b = jax.random.uniform(kb, (fout,), jnp.float32, -bound, bound)
        params += [w, b]
    return tuple(params)


def ranknet_reference(x_i, x_j, t_i, t_j, params):
    """Pure-JAX reference with the torch structure (two single_forward passes,
    s_i - s_j, clamps), mirroring the kernel's precision policy (bf16 matmul
    inputs for layers 1-3, f32 accumulation, f32 loss tail)."""
    w1, b1, w2, b2, w3, b3, w4, b4 = params
    w1b, w2b, w3b = (w.astype(jnp.bfloat16) for w in (w1, w2, w3))

    def single_forward(x):
        h = x.astype(jnp.bfloat16)
        h = jax.nn.relu(jnp.dot(h, w1b, preferred_element_type=jnp.float32) + b1)
        h = jax.nn.relu(jnp.dot(h.astype(jnp.bfloat16), w2b,
                                preferred_element_type=jnp.float32) + b2)
        h = jax.nn.relu(jnp.dot(h.astype(jnp.bfloat16), w3b,
                                preferred_element_type=jnp.float32) + b3)
        return jnp.dot(h, w4, preferred_element_type=jnp.float32) + b4   # (B, 1)

    s_diff = jnp.clip((single_forward(x_i) - single_forward(x_j))[:, 0], 0.1, 100.0)
    t_i = t_i.astype(jnp.float32)
    t_j = t_j.astype(jnp.float32)
    S_ij = jnp.where(t_i > t_j, 1.0, jnp.where(t_i < t_j, -1.0, 0.0))
    loss = (1.0 - S_ij) * s_diff / 2.0 + jnp.log(1.0 + jnp.exp(-s_diff))
    return jnp.clip(loss, 0.1, 10.0)


if __name__ == "__main__":
    INPUT_DIM = 32
    key = jax.random.PRNGKey(0)
    k1, k2, k3, k4, k5, k6, k7, k8, k9 = jax.random.split(key, 9)

    params = init_params(k5, INPUT_DIM)

    # Small test (single tile, block == full array).
    B = 8
    x_i = jax.random.normal(k1, (B, INPUT_DIM), jnp.float32)
    x_j = jax.random.normal(k2, (B, INPUT_DIM), jnp.float32)
    t_i = jax.random.randint(k3, (B,), 0, 3).astype(jnp.float32)
    t_j = jax.random.randint(k4, (B,), 0, 3).astype(jnp.float32)

    loss = jax.block_until_ready(ranknet_pallas(x_i, x_j, t_i, t_j, params))
    ref = ranknet_reference(x_i, x_j, t_i, t_j, params)
    assert loss.shape == (B,), loss.shape
    assert jnp.allclose(loss, ref, atol=1e-4, rtol=1e-4), (loss, ref)

    # Larger batch exercising the batch grid (3 tiles of 128 rows + padding).
    B2 = 300
    x_i2 = jax.random.normal(k6, (B2, INPUT_DIM), jnp.float32)
    x_j2 = jax.random.normal(k7, (B2, INPUT_DIM), jnp.float32)
    t_i2 = jax.random.randint(k8, (B2,), 0, 3).astype(jnp.float32)
    t_j2 = jax.random.randint(k9, (B2,), 0, 3).astype(jnp.float32)

    loss2 = jax.block_until_ready(
        ranknet_pallas(x_i2, x_j2, t_i2, t_j2, params, tile_b=128))
    ref2 = ranknet_reference(x_i2, x_j2, t_i2, t_j2, params)
    assert loss2.shape == (B2,), loss2.shape
    assert jnp.allclose(loss2, ref2, atol=1e-4, rtol=1e-4), (loss2, ref2)

    print("KERNEL_OK")
</pallas_src>

<mosaic_0001>
module attributes {stable_mosaic.version = 11 : i64} {
  func.func @ranknet_kernel(%arg0: i32, %arg1: memref<8x32xf32, #tpu.memory_space<vmem>>, %arg2: memref<8x32xf32, #tpu.memory_space<vmem>>, %arg3: memref<1x8xf32, #tpu.memory_space<vmem>>, %arg4: memref<1x8xf32, #tpu.memory_space<vmem>>, %arg5: memref<32x128xbf16, #tpu.memory_space<vmem>>, %arg6: memref<1x128xf32, #tpu.memory_space<vmem>>, %arg7: memref<128x64xbf16, #tpu.memory_space<vmem>>, %arg8: memref<1x64xf32, #tpu.memory_space<vmem>>, %arg9: memref<64x32xbf16, #tpu.memory_space<vmem>>, %arg10: memref<1x32xf32, #tpu.memory_space<vmem>>, %arg11: memref<1x32xf32, #tpu.memory_space<vmem>>, %arg12: memref<1x8xf32, #tpu.memory_space<vmem>>) attributes {dimension_semantics = [#tpu.dimension_semantics<parallel>], iteration_bounds = array<i64: 1>, scalar_prefetch = 0 : i64, scratch_operands = 0 : i64, tpu.core_type = #tpu.core_type<tc>, window_params = [{transform_indices = @transform_0, window_bounds = array<i64: 8, 32>}, {transform_indices = @transform_1, window_bounds = array<i64: 8, 32>}, {transform_indices = @transform_2, window_bounds = array<i64: 1, 8>}, {transform_indices = @transform_3, window_bounds = array<i64: 1, 8>}, {pipeline_mode = #tpu.pipeline_mode<synchronous>, transform_indices = @transform_4, window_bounds = array<i64: 32, 128>}, {pipeline_mode = #tpu.pipeline_mode<synchronous>, transform_indices = @transform_5, window_bounds = array<i64: 1, 128>}, {pipeline_mode = #tpu.pipeline_mode<synchronous>, transform_indices = @transform_6, window_bounds = array<i64: 128, 64>}, {pipeline_mode = #tpu.pipeline_mode<synchronous>, transform_indices = @transform_7, window_bounds = array<i64: 1, 64>}, {pipeline_mode = #tpu.pipeline_mode<synchronous>, transform_indices = @transform_8, window_bounds = array<i64: 64, 32>}, {pipeline_mode = #tpu.pipeline_mode<synchronous>, transform_indices = @transform_9, window_bounds = array<i64: 1, 32>}, {pipeline_mode = #tpu.pipeline_mode<synchronous>, transform_indices = @transform_10, window_bounds = array<i64: 1, 32>}, {transform_indices = @transform_11, window_bounds = array<i64: 1, 8>}]} {
    %c0 = arith.constant 0 : index
    %c0_0 = arith.constant 0 : index
    %0 = vector.load %arg1[%c0, %c0_0] : memref<8x32xf32, #tpu.memory_space<vmem>>, vector<8x32xf32>
    %c0_1 = arith.constant 0 : index
    %c0_2 = arith.constant 0 : index
    %1 = vector.load %arg2[%c0_1, %c0_2] : memref<8x32xf32, #tpu.memory_space<vmem>>, vector<8x32xf32>
    %2 = tpu.concatenate %0, %1 in 0 : vector<8x32xf32>, vector<8x32xf32> -> vector<16x32xf32>
    %3 = arith.truncf %2 : vector<16x32xf32> to vector<16x32xbf16>
    %c0_3 = arith.constant 0 : index
    %c0_4 = arith.constant 0 : index
    %4 = vector.load %arg5[%c0_3, %c0_4] : memref<32x128xbf16, #tpu.memory_space<vmem>>, vector<32x128xbf16>
    %cst = arith.constant dense<0.000000e+00> : vector<16x128xf32>
    %5 = tpu.matmul %3, %4, %cst {dimension_numbers = #tpu.dot_dimension_numbers<[1], [0], [0], [1], [0, 0, 1, 1], [], []>} : vector<16x32xbf16>, vector<32x128xbf16>, vector<16x128xf32> -> vector<16x128xf32>
    %c0_5 = arith.constant 0 : index
    %c0_6 = arith.constant 0 : index
    %6 = vector.load %arg6[%c0_5, %c0_6] : memref<1x128xf32, #tpu.memory_space<vmem>>, vector<1x128xf32>
    %7 = vector.broadcast %6 : vector<1x128xf32> to vector<16x128xf32>
    %8 = arith.addf %5, %7 : vector<16x128xf32>
    %cst_7 = arith.constant 0.000000e+00 : f32
    %9 = vector.broadcast %cst_7 : f32 to vector<16x128xf32>
    %10 = arith.maximumf %8, %9 : vector<16x128xf32>
    %11 = arith.truncf %10 : vector<16x128xf32> to vector<16x128xbf16>
    %c0_8 = arith.constant 0 : index
    %c0_9 = arith.constant 0 : index
    %12 = vector.load %arg7[%c0_8, %c0_9] : memref<128x64xbf16, #tpu.memory_space<vmem>>, vector<128x64xbf16>
    %cst_10 = arith.constant dense<0.000000e+00> : vector<16x64xf32>
    %13 = tpu.matmul %11, %12, %cst_10 {dimension_numbers = #tpu.dot_dimension_numbers<[1], [0], [0], [1], [0, 0, 1, 1], [], []>} : vector<16x128xbf16>, vector<128x64xbf16>, vector<16x64xf32> -> vector<16x64xf32>
    %c0_11 = arith.constant 0 : index
    %c0_12 = arith.constant 0 : index
    %14 = vector.load %arg8[%c0_11, %c0_12] : memref<1x64xf32, #tpu.memory_space<vmem>>, vector<1x64xf32>
    %15 = vector.broadcast %14 : vector<1x64xf32> to vector<16x64xf32>
    %16 = arith.addf %13, %15 : vector<16x64xf32>
    %cst_13 = arith.constant 0.000000e+00 : f32
    %17 = vector.broadcast %cst_13 : f32 to vector<16x64xf32>
    %18 = arith.maximumf %16, %17 : vector<16x64xf32>
    %19 = arith.truncf %18 : vector<16x64xf32> to vector<16x64xbf16>
    %c0_14 = arith.constant 0 : index
    %c0_15 = arith.constant 0 : index
    %20 = vector.load %arg9[%c0_14, %c0_15] : memref<64x32xbf16, #tpu.memory_space<vmem>>, vector<64x32xbf16>
    %cst_16 = arith.constant dense<0.000000e+00> : vector<16x32xf32>
    %21 = tpu.matmul %19, %20, %cst_16 {dimension_numbers = #tpu.dot_dimension_numbers<[1], [0], [0], [1], [0, 0, 1, 1], [], []>} : vector<16x64xbf16>, vector<64x32xbf16>, vector<16x32xf32> -> vector<16x32xf32>
    %c0_17 = arith.constant 0 : index
    %c0_18 = arith.constant 0 : index
    %22 = vector.load %arg10[%c0_17, %c0_18] : memref<1x32xf32, #tpu.memory_space<vmem>>, vector<1x32xf32>
    %23 = vector.broadcast %22 : vector<1x32xf32> to vector<16x32xf32>
    %24 = arith.addf %21, %23 : vector<16x32xf32>
    %cst_19 = arith.constant 0.000000e+00 : f32
    %25 = vector.broadcast %cst_19 : f32 to vector<16x32xf32>
    %26 = arith.maximumf %24, %25 : vector<16x32xf32>
    %27 = vector.extract_strided_slice %26 {offsets = [0, 0], sizes = [8, 32], strides = [1, 1]} : vector<16x32xf32> to vector<8x32xf32>
    %28 = vector.extract_strided_slice %26 {offsets = [8, 0], sizes = [8, 32], strides = [1, 1]} : vector<16x32xf32> to vector<8x32xf32>
    %29 = arith.subf %27, %28 : vector<8x32xf32>
    %c0_20 = arith.constant 0 : index
    %c0_21 = arith.constant 0 : index
    %30 = vector.load %arg11[%c0_20, %c0_21] : memref<1x32xf32, #tpu.memory_space<vmem>>, vector<1x32xf32>
    "tpu.trace_start"() <{level = 10 : i32, message = "od,bd->ob"}> : () -> ()
    %cst_22 = arith.constant dense<0.000000e+00> : vector<1x8xf32>
    %31 = tpu.matmul %30, %29, %cst_22 {dimension_numbers = #tpu.dot_dimension_numbers<[1], [1], [0], [0], [0, 0, 1, 0], [], []>} : vector<1x32xf32>, vector<8x32xf32>, vector<1x8xf32> -> vector<1x8xf32>
    %cst_23 = arith.constant 1.000000e-01 : f32
    %cst_24 = arith.constant 1.000000e+02 : f32
    "tpu.trace_stop"() : () -> ()
    %32 = vector.broadcast %cst_23 : f32 to vector<1x8xf32>
    %33 = arith.maximumf %32, %31 : vector<1x8xf32>
    %34 = vector.broadcast %cst_24 : f32 to vector<1x8xf32>
    %35 = arith.minimumf %34, %33 : vector<1x8xf32>
    %c0_25 = arith.constant 0 : index
    %c0_26 = arith.constant 0 : index
    %36 = vector.load %arg3[%c0_25, %c0_26] : memref<1x8xf32, #tpu.memory_space<vmem>>, vector<1x8xf32>
    %c0_27 = arith.constant 0 : index
    %c0_28 = arith.constant 0 : index
    %37 = vector.load %arg4[%c0_27, %c0_28] : memref<1x8xf32, #tpu.memory_space<vmem>>, vector<1x8xf32>
    %38 = arith.cmpf ogt, %36, %37 : vector<1x8xf32>
    %39 = arith.cmpf olt, %36, %37 : vector<1x8xf32>
    %cst_29 = arith.constant -1.000000e+00 : f32
    %cst_30 = arith.constant 0.000000e+00 : f32
    %40 = vector.broadcast %cst_29 : f32 to vector<1x8xf32>
    %41 = vector.broadcast %cst_30 : f32 to vector<1x8xf32>
    %42 = arith.select %39, %40, %41 : vector<1x8xi1>, vector<1x8xf32>
    %cst_31 = arith.constant 1.000000e+00 : f32
    %43 = vector.broadcast %cst_31 : f32 to vector<1x8xf32>
    %44 = arith.select %38, %43, %42 : vector<1x8xi1>, vector<1x8xf32>
    %cst_32 = arith.constant 1.000000e+00 : f32
    %45 = vector.broadcast %cst_32 : f32 to vector<1x8xf32>
    %46 = arith.subf %45, %44 : vector<1x8xf32>
    %47 = arith.mulf %46, %35 : vector<1x8xf32>
    %cst_33 = arith.constant 5.000000e-01 : f32
    %48 = vector.broadcast %cst_33 : f32 to vector<1x8xf32>
    %49 = arith.mulf %47, %48 : vector<1x8xf32>
    %cst_34 = arith.constant 0.000000e+00 : f32
    %50 = vector.broadcast %cst_34 : f32 to vector<1x8xf32>
    %51 = arith.subf %50, %35 : vector<1x8xf32>
    %52 = math.exp %51 : vector<1x8xf32>
    %cst_35 = arith.constant 1.000000e+00 : f32
    %53 = vector.broadcast %cst_35 : f32 to vector<1x8xf32>
    %54 = arith.addf %53, %52 : vector<1x8xf32>
    %55 = math.log %54 : vector<1x8xf32>
    %56 = arith.addf %49, %55 : vector<1x8xf32>
    %cst_36 = arith.constant 1.000000e-01 : f32
    %cst_37 = arith.constant 1.000000e+01 : f32
    %57 = vector.broadcast %cst_36 : f32 to vector<1x8xf32>
    %58 = arith.maximumf %57, %56 : vector<1x8xf32>
    %59 = vector.broadcast %cst_37 : f32 to vector<1x8xf32>
    %60 = arith.minimumf %59, %58 : vector<1x8xf32>
    %c0_38 = arith.constant 0 : index
    %c0_39 = arith.constant 0 : index
    %61 = vector.load %arg12[%c0_38, %c0_39] : memref<1x8xf32, #tpu.memory_space<vmem>>, vector<1x8xf32>
    tpu.vector_store %arg12[%c0_38, %c0_39], %60 {strides = array<i32>} : memref<1x8xf32, #tpu.memory_space<vmem>>, vector<1x8xf32>,
    return
  }
  func.func @transform_0(%arg0: i32) -> (i32, i32) {
    %c0_i32 = arith.constant 0 : i32
    %c0_i32_0 = arith.constant 0 : i32
    return %arg0, %c0_i32 : i32, i32
  }
  func.func @transform_1(%arg0: i32) -> (i32, i32) {
    %c0_i32 = arith.constant 0 : i32
    %c0_i32_0 = arith.constant 0 : i32
    return %arg0, %c0_i32 : i32, i32
  }
  func.func @transform_2(%arg0: i32) -> (i32, i32) {
    %c0_i32 = arith.constant 0 : i32
    %c0_i32_0 = arith.constant 0 : i32
    return %c0_i32, %arg0 : i32, i32
  }
  func.func @transform_3(%arg0: i32) -> (i32, i32) {
    %c0_i32 = arith.constant 0 : i32
    %c0_i32_0 = arith.constant 0 : i32
    return %c0_i32, %arg0 : i32, i32
  }
  func.func @transform_4(%arg0: i32) -> (i32, i32) {
    %c0_i32 = arith.constant 0 : i32
    %c0_i32_0 = arith.constant 0 : i32
    %c0_i32_1 = arith.constant 0 : i32
    return %c0_i32, %c0_i32_0 : i32, i32
  }
  func.func @transform_5(%arg0: i32) -> (i32, i32) {
    %c0_i32 = arith.constant 0 : i32
    %c0_i32_0 = arith.constant 0 : i32
    %c0_i32_1 = arith.constant 0 : i32
    return %c0_i32, %c0_i32_0 : i32, i32
  }
  func.func @transform_6(%arg0: i32) -> (i32, i32) {
    %c0_i32 = arith.constant 0 : i32
    %c0_i32_0 = arith.constant 0 : i32
    %c0_i32_1 = arith.constant 0 : i32
    return %c0_i32, %c0_i32_0 : i32, i32
  }
  func.func @transform_7(%arg0: i32) -> (i32, i32) {
    %c0_i32 = arith.constant 0 : i32
    %c0_i32_0 = arith.constant 0 : i32
    %c0_i32_1 = arith.constant 0 : i32
    return %c0_i32, %c0_i32_0 : i32, i32
  }
  func.func @transform_8(%arg0: i32) -> (i32, i32) {
    %c0_i32 = arith.constant 0 : i32
    %c0_i32_0 = arith.constant 0 : i32
    %c0_i32_1 = arith.constant 0 : i32
    return %c0_i32, %c0_i32_0 : i32, i32
  }
  func.func @transform_9(%arg0: i32) -> (i32, i32) {
    %c0_i32 = arith.constant 0 : i32
    %c0_i32_0 = arith.constant 0 : i32
    %c0_i32_1 = arith.constant 0 : i32
    return %c0_i32, %c0_i32_0 : i32, i32
  }
  func.func @transform_10(%arg0: i32) -> (i32, i32) {
    %c0_i32 = arith.constant 0 : i32
    %c0_i32_0 = arith.constant 0 : i32
    %c0_i32_1 = arith.constant 0 : i32
    return %c0_i32, %c0_i32_0 : i32, i32
  }
  func.func @transform_11(%arg0: i32) -> (i32, i32) {
    %c0_i32 = arith.constant 0 : i32
    %c0_i32_0 = arith.constant 0 : i32
    return %c0_i32, %arg0 : i32, i32
  }
}

</mosaic_0001>

<llo_original>
// kernel: ranknet_pallas.1
$region0: #{ranknet_pallas.1}
  #allocation0 [shape = 'u32[]', space=smem, size = 0x4, offset = 0x4, fixed_abs, tag = 'smem constant byte address 0x4 - core index']
  #allocation1 [shape = 'u32[72,128]{1,0:T(1,128)}', space=vmem, size = 0x9000, scoped, tag = 'internal scratch']
  %s0 = inlined_call_operand.vmem [shape: f32[8,32], index: 0, kind: input, shape index: {}]
  %s1 = inlined_call_operand.vmem [shape: f32[8,32], index: 1, kind: input, shape index: {}]
  %s2 = inlined_call_operand.vmem [shape: f32[1,8], index: 2, kind: input, shape index: {}]
  %s3 = inlined_call_operand.vmem [shape: f32[1,8], index: 3, kind: input, shape index: {}]
  %s4 = inlined_call_operand.vmem [shape: bf16[32,128], index: 4, kind: input, shape index: {}]
  %s5 = inlined_call_operand.vmem [shape: f32[1,128], index: 5, kind: input, shape index: {}]
  %s6 = inlined_call_operand.vmem [shape: bf16[128,64], index: 6, kind: input, shape index: {}]
  %s7 = inlined_call_operand.vmem [shape: f32[1,64], index: 7, kind: input, shape index: {}]
  %s8 = inlined_call_operand.vmem [shape: bf16[64,32], index: 8, kind: input, shape index: {}]
  %s9 = inlined_call_operand.vmem [shape: f32[1,32], index: 9, kind: input, shape index: {}]
  %s10 = inlined_call_operand.vmem [shape: f32[1,32], index: 10, kind: input, shape index: {}]
  %s11 = inlined_call_operand.hbm [shape: f32[1,8], index: 11, kind: output, shape index: {}]
  %s12 = sld [smem:[#allocation0]]
  $region54: #{ranknet_pallas.1} parent=0
    _
  %s14 = ssub.s32 1, %s12
  %s15 = scalar_select 0, %s14, %s12
  $region1: #{ranknet_pallas.1} parent=0
    #allocation2 [shape = 'u8[512]{0}', space=vmem, size = 0x400, scoped, tag = 'output window, operand 0, single buffered']
    #allocation3 [shape = 's32[1]{0}', space=sflag, size = 0x4, scoped, tag = 'scoped memory for ranknet_pallas.1']
    %16 = vsyncpa [#allocation3], 0
    // Predicated region
    $region2: #{ranknet_pallas.1} parent=1 // pred_check
      _
    $region3: #{ranknet_pallas.1} parent=1 // pred_check_branch
      %18 = sbr.rel (0) target = $region5
    $region4: #{ranknet_pallas.1} parent=1 // pred_region
      _
    $region5: #{ranknet_pallas.1} parent=1 // pred_fallthru
      _
    // Predicated region
    $region6: #{ranknet_pallas.1} parent=1 // pred_check
      _
    $region7: #{ranknet_pallas.1} parent=1 // pred_check_branch
      %20 = sbr.rel (0) target = $region9
    $region8: #{ranknet_pallas.1} parent=1 // pred_region
      _
    $region9: #{ranknet_pallas.1} parent=1 // pred_fallthru
      _
    // Predicated region
    $region10: #{ranknet_pallas.1} parent=1 // pred_check
      _
    $region11: #{ranknet_pallas.1} parent=1 // pred_check_branch
      %22 = sbr.rel (0) target = $region13
    $region12: #{ranknet_pallas.1} parent=1 // pred_region
      _
    $region13: #{ranknet_pallas.1} parent=1 // pred_fallthru
      _
    // Predicated region
    $region14: #{ranknet_pallas.1} parent=1 // pred_check
      _
    $region15: #{ranknet_pallas.1} parent=1 // pred_check_branch
      %24 = sbr.rel (0) target = $region17
    $region16: #{ranknet_pallas.1} parent=1 // pred_region
      _
    $region17: #{ranknet_pallas.1} parent=1 // pred_fallthru
      _
    // Predicated region
    $region18: #{ranknet_pallas.1} parent=1 // pred_check
      _
    $region19: #{ranknet_pallas.1} parent=1 // pred_check_branch
      %26 = sbr.rel (0) target = $region21
    $region20: #{ranknet_pallas.1} parent=1 // pred_region
      _
    $region21: #{ranknet_pallas.1} parent=1 // pred_fallthru
      _
    // Predicated region
    $region22: #{ranknet_pallas.1} parent=1 // pred_check
      _
    $region23: #{ranknet_pallas.1} parent=1 // pred_check_branch
      %28 = sbr.rel (0) target = $region25
    $region24: #{ranknet_pallas.1} parent=1 // pred_region
      _
    $region25: #{ranknet_pallas.1} parent=1 // pred_fallthru
      _
    // Predicated region
    $region26: #{ranknet_pallas.1} parent=1 // pred_check
      _
    $region27: #{ranknet_pallas.1} parent=1 // pred_check_branch
      %30 = sbr.rel (0) target = $region29
    $region28: #{ranknet_pallas.1} parent=1 // pred_region
      _
    $region29: #{ranknet_pallas.1} parent=1 // pred_fallthru
      _
    // Predicated region
    $region30: #{ranknet_pallas.1} parent=1 // pred_check
      _
    $region31: #{ranknet_pallas.1} parent=1 // pred_check_branch
      %32 = sbr.rel (0) target = $region33
    $region32: #{ranknet_pallas.1} parent=1 // pred_region
      _
    $region33: #{ranknet_pallas.1} parent=1 // pred_fallthru
      _
    // Predicated region
    $region34: #{ranknet_pallas.1} parent=1 // pred_check
      _
    $region35: #{ranknet_pallas.1} parent=1 // pred_check_branch
      %34 = sbr.rel (0) target = $region37
    $region36: #{ranknet_pallas.1} parent=1 // pred_region
      _
    $region37: #{ranknet_pallas.1} parent=1 // pred_fallthru
      _
    // Predicated region
    $region38: #{ranknet_pallas.1} parent=1 // pred_check
      _
    $region39: #{ranknet_pallas.1} parent=1 // pred_check_branch
      %36 = sbr.rel (0) target = $region41
    $region40: #{ranknet_pallas.1} parent=1 // pred_region
      _
    $region41: #{ranknet_pallas.1} parent=1 // pred_fallthru
      _
    // Predicated region
    $region42: #{ranknet_pallas.1} parent=1 // pred_check
      _
    $region43: #{ranknet_pallas.1} parent=1 // pred_check_branch
      %38 = sbr.rel (0) target = $region45
    $region44: #{ranknet_pallas.1} parent=1 // pred_region
      _
    $region45: #{ranknet_pallas.1} parent=1 // pred_fallthru
      _
    %v40 = vld [vmem:[%s0] sm:$0xff]
    %v41 = vld [vmem:[%s1] sm:$0xff]
    %v42 = vpack.c.bf16 %v41, %v40
    %v43 = vld [vmem:[%s4] sm:$0xf]
    %v44 = vld [vmem:[%s4 + $0x4] sm:$0xf]
    %v45 = vld [vmem:[%s4 + $0x8] sm:$0xf]
    %v46 = vld [vmem:[%s4 + $0xc] sm:$0xf]
    %v47 = vld [vmem:[%s5] sm:$0x1]
    %v49 = vperm.slane %v47, 0
    %v55 = vunpack.c.l.b16 %v43
    %v56 = vunpack.c.l.b16 %v44
    %v57 = vunpack.c.l.b16 %v45
    %v58 = vunpack.c.l.b16 %v46
    %v59 = vpack.c.b16 %v56, %v55
    %v60 = vpack.c.b16 %v58, %v57
    %vm63 = vcmask 261120
    %v65 = vsel %vm63, %v42, 0
    %67 = vmatpush.bf16.msra.mxu0 0
    %68 = vmatpush.bf16.msra.mxu0 0
    %69 = vmatpush.bf16.msra.mxu0 0
    %70 = vmatpush.bf16.msra.mxu0 0
    %71 = vmatpush.bf16.msra.mxu0 0
    %72 = vmatpush.bf16.msra.mxu0 0
    %73 = vmatpush.bf16.msra.mxu0 %v60
    %74 = vmatpush.bf16.msra.mxu0 %v59
    %75 = vmatmul.bf16.gmra.mxu0 %v65
    %v76 = vpop.f32.mrf.mxu0
    %v77 = vadd.f32 %v49, %v76
    %v78 = vpop.f32.mrf.mxu0
    %v79 = vadd.f32 %v49, %v78
    %80 = vdwg.mxu0
    %v81 = vmax.f32 %v77, 0.0
    %v82 = vmax.f32 %v79, 0.0
    %v83 = vpack.c.bf16 %v82, %v81
    %v84 = vld [vmem:[%s6] sm:$0xf]
    %v85 = vld [vmem:[%s6 + $0x4] sm:$0xf]
    %v86 = vld [vmem:[%s6 + $0x8] sm:$0xf]
    %v87 = vld [vmem:[%s6 + $0xc] sm:$0xf]
    %v88 = vld [vmem:[%s6 + $0x10] sm:$0xf]
    %v89 = vld [vmem:[%s6 + $0x14] sm:$0xf]
    %v90 = vld [vmem:[%s6 + $0x18] sm:$0xf]
    %v91 = vld [vmem:[%s6 + $0x1c] sm:$0xf]
    %v92 = vld [vmem:[%s6 + $0x20] sm:$0xf]
    %v93 = vld [vmem:[%s6 + $0x24] sm:$0xf]
    %v94 = vld [vmem:[%s6 + $0x28] sm:$0xf]
    %v95 = vld [vmem:[%s6 + $0x2c] sm:$0xf]
    %v96 = vld [vmem:[%s6 + $0x30] sm:$0xf]
    %v97 = vld [vmem:[%s6 + $0x34] sm:$0xf]
    %v98 = vld [vmem:[%s6 + $0x38] sm:$0xf]
    %v99 = vld [vmem:[%s6 + $0x3c] sm:$0xf]
    %v100 = vld [vmem:[%s7] sm:$0x1]
    %v102 = vperm.slane %v100, 0
    %v120 = vunpack.c.l.b16 %v84
    %v121 = vunpack.c.l.b16 %v85
    %v122 = vunpack.c.l.b16 %v86
    %v123 = vunpack.c.l.b16 %v87
    %v124 = vunpack.c.l.b16 %v88
    %v125 = vunpack.c.l.b16 %v89
    %v126 = vunpack.c.l.b16 %v90
    %v127 = vunpack.c.l.b16 %v91
    %v128 = vunpack.c.l.b16 %v92
    %v129 = vunpack.c.l.b16 %v93
    %v130 = vunpack.c.l.b16 %v94
    %v131 = vunpack.c.l.b16 %v95
    %v132 = vunpack.c.l.b16 %v96
    %v133 = vunpack.c.l.b16 %v97
    %v134 = vunpack.c.l.b16 %v98
    %v135 = vunpack.c.l.b16 %v99
    %v136 = vpack.c.b16 %v121, %v120
    %v137 = vpack.c.b16 %v123, %v122
    %v138 = vpack.c.b16 %v125, %v124
    %v139 = vpack.c.b16 %v127, %v126
    %v140 = vpack.c.b16 %v129, %v128
    %v141 = vpack.c.b16 %v131, %v130
    %v142 = vpack.c.b16 %v133, %v132
    %v143 = vpack.c.b16 %v135, %v134
    %152 = vmatpush.bf16.msra.mxu0 %v143
    %153 = vmatpush.bf16.msra.mxu0 %v142
    %154 = vmatpush.bf16.msra.mxu0 %v141
    %155 = vmatpush.bf16.msra.mxu0 %v140
    %156 = vmatpush.bf16.msra.mxu0 %v139
    %157 = vmatpush.bf16.msra.mxu0 %v138
    %158 = vmatpush.bf16.msra.mxu0 %v137
    %159 = vmatpush.bf16.msra.mxu0 %v136
    %160 = vmatmul.bf16.gmra.mxu0 %v83
    %v161 = vpop.f32.mrf.mxu0
    %v162 = vadd.f32 %v102, %v161
    %v163 = vpop.f32.mrf.mxu0
    %v164 = vadd.f32 %v102, %v163
    %165 = vdwg.mxu0
    %v166 = vmax.f32 %v162, 0.0
    %v167 = vmax.f32 %v164, 0.0
    %v168 = vpack.c.bf16 %v167, %v166
    %v169 = vld [vmem:[%s8] sm:$0xf]
    %v170 = vld [vmem:[%s8 + $0x4] sm:$0xf]
    %v171 = vld [vmem:[%s8 + $0x8] sm:$0xf]
    %v172 = vld [vmem:[%s8 + $0xc] sm:$0xf]
    %v173 = vld [vmem:[%s8 + $0x10] sm:$0xf]
    %v174 = vld [vmem:[%s8 + $0x14] sm:$0xf]
    %v175 = vld [vmem:[%s8 + $0x18] sm:$0xf]
    %v176 = vld [vmem:[%s8 + $0x1c] sm:$0xf]
    %v177 = vld [vmem:[%s9] sm:$0x1]
    %v179 = vperm.slane %v177, 0
    %v189 = vunpack.c.l.b16 %v169
    %v190 = vunpack.c.l.b16 %v170
    %v191 = vunpack.c.l.b16 %v171
    %v192 = vunpack.c.l.b16 %v172
    %v193 = vunpack.c.l.b16 %v173
    %v194 = vunpack.c.l.b16 %v174
    %v195 = vunpack.c.l.b16 %v175
    %v196 = vunpack.c.l.b16 %v176
    %v197 = vpack.c.b16 %v190, %v189
    %v198 = vpack.c.b16 %v192, %v191
    %v199 = vpack.c.b16 %v194, %v193
    %v200 = vpack.c.b16 %v196, %v195
    %vm205 = vcmask 523264
    %v207 = vsel %vm205, %v168, 0
    %209 = vmatpush.bf16.msra.mxu0 0
    %210 = vmatpush.bf16.msra.mxu0 0
    %211 = vmatpush.bf16.msra.mxu0 0
    %212 = vmatpush.bf16.msra.mxu0 0
    %213 = vmatpush.bf16.msra.mxu0 %v200
    %214 = vmatpush.bf16.msra.mxu0 %v199
    %215 = vmatpush.bf16.msra.mxu0 %v198
    %216 = vmatpush.bf16.msra.mxu0 %v197
    %217 = vmatmul.bf16.gmra.mxu0 %v207
    %v218 = vpop.f32.mrf.mxu0
    %v219 = vadd.f32 %v179, %v218
    %v220 = vpop.f32.mrf.mxu0
    %v221 = vadd.f32 %v179, %v220
    %222 = vdwg.mxu0
    %v223 = vmax.f32 %v219, 0.0
    %v224 = vmax.f32 %v221, 0.0
    %v225 = vsub.f32 %v223, %v224
    %v226 = vld [vmem:[%s10] sm:$0x1]
    %v228 = vsel %vm63, %v226, 0
    %v231 = vsel %vm63, %v225, 0
    %233 = vmatpush.xpose.msra.mxu0 0.0
    %234 = vmatpush.xpose.msra.mxu0 0.0
    %235 = vmatpush.xpose.msra.mxu0 0.0
    %236 = vmatpush.xpose.msra.mxu0 0.0
    %237 = vmatpush.xpose.msra.mxu0 0.0
    %238 = vmatpush.xpose.msra.mxu0 0.0
    %239 = vmatpush.xpose.msra.mxu0 0.0
    %240 = vmatpush.xpose.msra.mxu0 0.0
    %241 = vmatpush.xpose.msra.mxu0 0.0
    %242 = vmatpush.xpose.msra.mxu0 0.0
    %243 = vmatpush.xpose.msra.mxu0 0.0
    %244 = vmatpush.xpose.msra.mxu0 0.0
    %245 = vmatpush.xpose.msra.mxu0 0.0
    %246 = vmatpush.xpose.msra.mxu0 0.0
    %247 = vmatpush.xpose.msra.mxu0 0.0
    %248 = vmatpush.xpose.msra.mxu0 %v231
    %249 = vmatmul.f32.gmra.mxu0 %v228
    %v250 = vpop.f32.mrf.mxu0
    %v251 = vadd.f32 0.0, %v250
    %252 = vdwg.mxu0
    %v253 = vmax.f32 %v251, 0.1
    %v254 = vmin.f32 %v253, 100.0
    %v255 = vld [vmem:[%s2] sm:$0x1]
    %v256 = vld [vmem:[%s3] sm:$0x1]
    %vm257 = vcmp.gt.f32.partialorder %v255, %v256
    %vm258 = vcmp.lt.f32.partialorder %v255, %v256
    %v259 = vsel %vm258, -1.0, 0.0
    %v260 = vsel %vm257, 1.0, %v259
    %v261 = vsub.f32 1.0, %v260
    %v262 = vmul.f32 %v261, %v254
    %v263 = vmul.f32 %v262, 0.5
    %v264 = vsub.f32 0.0, %v254
    %v265 = vmul.f32 %v264, 1.442695
    %v266 = vpow.pop %v265
    %v267 = vadd.f32 %v266, 1.0
    %v268 = vlog2.pop %v267
    %v269 = vmul.f32 %v268, 0.6931472
    %v270 = vadd.f32 %v263, %v269
    %v271 = vmax.f32 %v270, 0.1
    %v272 = vmin.f32 %v271, 10.0
    %vm273 = vcmask 57344
    %274 = vst.msk [vmem:[#allocation2] sm:$0x1] %vm273, %v272
    // Predicated region
    $region46: #{ranknet_pallas.1} parent=1 // pred_check
      _
    $region47: #{ranknet_pallas.1} parent=1 // pred_check_branch
      %276 = sbr.rel (0) target = $region49
    $region48: #{ranknet_pallas.1} parent=1 // pred_region
      %278 = vsyncadd [#allocation3], 0
      %s280 = sshll.u32 [#allocation2], 4
      %s281 = int_to_ptr.vmem [resolvable:$true] %s280
      %s282 = sshll.u32 %s11, 4
      %s283 = int_to_ptr.hbm [resolvable:$true] %s282
      %285 = dma.vmem_to_hbm [thread:$0]  %s281, 16, %s283, [#allocation3]
    $region49: #{ranknet_pallas.1} parent=1 // pred_fallthru
      _
    // Predicated region
    $region50: #{ranknet_pallas.1} parent=1 // pred_check
      _
    $region51: #{ranknet_pallas.1} parent=1 // pred_check_branch
      %287 = sbr.rel (0) target = $region53
    $region52: #{ranknet_pallas.1} parent=1 // pred_region
      %289 = dma.done [#allocation3], 16
    $region53: #{ranknet_pallas.1} parent=1 // pred_fallthru
      _
    %290 = vsyncpa [#allocation3], 1

</llo_original>
